<compile_context>
chip_gen: v5e
topology: v5e:2x2
jax: 0.10.0
libtpu: 0.0.40
codegen_flags: <defaults>
</compile_context>

<pallas_src>
import jax
import jax.numpy as jnp
import numpy as np
from jax.experimental import pallas as pl
from jax.experimental.pallas import tpu as pltpu


def _round_up(n, m):
    return ((n + m - 1) // m) * m


def _mlp_kernel(x_ref, w1_ref, b1_ref, w23_ref, b23_ref, o_ref):
    # Layer 1 (12 -> 10) on the MXU, f32 accumulation; bias + ReLU on the VPU.
    h1 = jnp.dot(x_ref[...], w1_ref[...], preferred_element_type=jnp.float32)
    h1 = jnp.maximum(h1 + b1_ref[...], 0.0)                      # (tile_b, 10) f32

    # Folded layer2+layer3 (10 -> 1): an N=1/K=10 MXU matmul would waste the
    # systolic array, so do a VPU broadcast-multiply + XLU lane reduce instead.
    h3 = jnp.sum(h1 * w23_ref[...], axis=-1, keepdims=True) + b23_ref[...]
    h3 = jnp.maximum(h3, 0.0)                                     # (tile_b, 1)

    # sigmoid(relu(.)) epilogue in f32; exp goes to the (otherwise idle) EUP.
    # relu guarantees -h3 <= 0, so exp never overflows; exact divide preserves
    # the 1e-5 accuracy target (no approx reciprocal needed here).
    o_ref[...] = 1.0 / (1.0 + jnp.exp(-h3))


# Default batch tile.  512 rows reaches ~85% of the mem-bound roofline while
# keeping double-buffered, lane-padded VMEM usage (~1.5 MiB) far below the
# scoped-VMEM default on every generation (v7x has only 64 MiB total VMEM).
_TILE_B_DEFAULT = 512


def neural_network_forward(x, params, *, tile_b=None, use_bf16_inputs=False):
    """Fused forward of the 12->10->20->1 MLP.

    x: (B, 12) float32.
    params: weights stored transposed as [in, out], biases as [1, out].
    """
    B = x.shape[0]
    w1, b1 = params["w1"], params["b1"]
    w2, b2 = params["w2"], params["b2"]
    w3, b3 = params["w3"], params["b3"]

    # Fold the activation-free layer2+layer3 into one 10->1 linear (exact up
    # to fp rounding, far below the 1e-5 test tolerance).
    w23 = (w2 @ w3).reshape(1, 10).astype(jnp.float32)            # (1, 10)
    b23 = (b2 @ w3 + b3).reshape(1, 1).astype(jnp.float32)        # (1, 1)

    if use_bf16_inputs:
        # Halves HBM read bytes for the mem-bound large-batch case; the matmul
        # still accumulates f32 and the epilogue is f32 (v5e has no bf16 VPU/EUP).
        x = x.astype(jnp.bfloat16)
        w1 = w1.astype(jnp.bfloat16)

    if tile_b is None:
        tile_b = min(_TILE_B_DEFAULT, _round_up(B, 8))
    tile_b = _round_up(tile_b, 8)                                 # clean (8,128) sublane tiling
    b_pad = _round_up(B, tile_b)
    if b_pad != B:
        x = jnp.pad(x, ((0, b_pad - B), (0, 0)))                  # zero-pad ragged last tile

    grid = (b_pad // tile_b,)
    out = pl.pallas_call(
        _mlp_kernel,
        out_shape=jax.ShapeDtypeStruct((b_pad, 1), jnp.float32),
        grid_spec=pltpu.PrefetchScalarGridSpec(
            num_scalar_prefetch=0,
            grid=grid,
            in_specs=[
                pl.BlockSpec((tile_b, 12), lambda i: (i, 0)),     # x: tiled over batch
                pl.BlockSpec((12, 10), lambda i: (0, 0)),         # w1: resident across grid
                pl.BlockSpec((1, 10), lambda i: (0, 0)),          # b1: resident
                pl.BlockSpec((1, 10), lambda i: (0, 0)),          # w23 (folded): resident
                pl.BlockSpec((1, 1), lambda i: (0, 0)),           # b23 (folded): resident
            ],
            out_specs=pl.BlockSpec((tile_b, 1), lambda i: (i, 0)),
        ),
        compiler_params=pltpu.CompilerParams(
            # Batch tiles are independent -> shard across v7x's 2 TensorCores.
            dimension_semantics=("parallel",),
        ),
    )(x, w1, b1, w23, b23)
    return out[:B]


def init_params(key):
    """Deterministic init mimicking torch.nn.Linear's U(-1/sqrt(in), 1/sqrt(in)).

    Weights stored already transposed to [in, out]; biases as [1, out].
    """
    dims = [(12, 10), (10, 20), (20, 1)]
    params = {}
    keys = jax.random.split(key, 2 * len(dims))
    for i, (fan_in, fan_out) in enumerate(dims):
        bound = 1.0 / np.sqrt(fan_in)
        w = jax.random.uniform(keys[2 * i], (fan_in, fan_out),
                               minval=-bound, maxval=bound, dtype=jnp.float32)
        b = jax.random.uniform(keys[2 * i + 1], (1, fan_out),
                               minval=-bound, maxval=bound, dtype=jnp.float32)
        params[f"w{i + 1}"] = w
        params[f"b{i + 1}"] = b
    return params


def _reference_forward(x, params):
    """Pure-JAX reference with the ORIGINAL (un-folded) 3-layer structure."""
    h1 = jnp.maximum(x @ params["w1"] + params["b1"], 0.0)
    h2 = h1 @ params["w2"] + params["b2"]
    h3 = h2 @ params["w3"] + params["b3"]
    return jax.nn.sigmoid(jnp.maximum(h3, 0.0))


if __name__ == "__main__":
    key = jax.random.PRNGKey(0)
    k_x, k_p = jax.random.split(key)

    params = init_params(k_p)

    # 1) Small-shape check (single tile path, tile_b = 8).
    batch = 8
    x = jax.random.normal(k_x, (batch, 12), dtype=jnp.float32)
    y = jax.block_until_ready(neural_network_forward(x, params))
    assert y.shape == (batch, 1)
    np.testing.assert_allclose(np.asarray(y), np.asarray(_reference_forward(x, params)),
                               rtol=1e-5, atol=1e-5)

    # 2) Multi-tile + ragged-padding path (B=100, tile_b=32 -> padded to 128).
    batch2 = 100
    x2 = jax.random.normal(k_x, (batch2, 12), dtype=jnp.float32)
    y2 = jax.block_until_ready(neural_network_forward(x2, params, tile_b=32))
    assert y2.shape == (batch2, 1)
    np.testing.assert_allclose(np.asarray(y2), np.asarray(_reference_forward(x2, params)),
                               rtol=1e-5, atol=1e-5)

    # 3) Default-tile path (B=600 -> tile_b=512, padded to 1024, grid=(2,)),
    #    exercising the production tile size and the parallel grid axis.
    batch3 = 600
    x3 = jax.random.normal(k_x, (batch3, 12), dtype=jnp.float32)
    y3 = jax.block_until_ready(neural_network_forward(x3, params))
    assert y3.shape == (batch3, 1)
    np.testing.assert_allclose(np.asarray(y3), np.asarray(_reference_forward(x3, params)),
                               rtol=1e-5, atol=1e-5)

    print("KERNEL_OK")
</pallas_src>

<mosaic_0001>
module attributes {stable_mosaic.version = 11 : i64} {
  func.func @_mlp_kernel(%arg0: i32, %arg1: memref<8x12xf32, #tpu.memory_space<vmem>>, %arg2: memref<12x10xf32, #tpu.memory_space<vmem>>, %arg3: memref<1x10xf32, #tpu.memory_space<vmem>>, %arg4: memref<1x10xf32, #tpu.memory_space<vmem>>, %arg5: memref<1x1xf32, #tpu.memory_space<vmem>>, %arg6: memref<8x1xf32, #tpu.memory_space<vmem>>) attributes {dimension_semantics = [#tpu.dimension_semantics<parallel>], iteration_bounds = array<i64: 1>, scalar_prefetch = 0 : i64, scratch_operands = 0 : i64, tpu.core_type = #tpu.core_type<tc>, window_params = [{transform_indices = @transform_0, window_bounds = array<i64: 8, 12>}, {pipeline_mode = #tpu.pipeline_mode<synchronous>, transform_indices = @transform_1, window_bounds = array<i64: 12, 10>}, {pipeline_mode = #tpu.pipeline_mode<synchronous>, transform_indices = @transform_2, window_bounds = array<i64: 1, 10>}, {pipeline_mode = #tpu.pipeline_mode<synchronous>, transform_indices = @transform_3, window_bounds = array<i64: 1, 10>}, {pipeline_mode = #tpu.pipeline_mode<synchronous>, transform_indices = @transform_4, window_bounds = array<i64: 1, 1>}, {transform_indices = @transform_5, window_bounds = array<i64: 8, 1>}]} {
    %c0 = arith.constant 0 : index
    %c0_0 = arith.constant 0 : index
    %0 = vector.load %arg1[%c0, %c0_0] : memref<8x12xf32, #tpu.memory_space<vmem>>, vector<8x12xf32>
    %c0_1 = arith.constant 0 : index
    %c0_2 = arith.constant 0 : index
    %1 = vector.load %arg2[%c0_1, %c0_2] : memref<12x10xf32, #tpu.memory_space<vmem>>, vector<12x10xf32>
    %cst = arith.constant dense<0.000000e+00> : vector<8x10xf32>
    %2 = tpu.matmul %0, %1, %cst {dimension_numbers = #tpu.dot_dimension_numbers<[1], [0], [0], [1], [0, 0, 1, 1], [], []>} : vector<8x12xf32>, vector<12x10xf32>, vector<8x10xf32> -> vector<8x10xf32>
    %c0_3 = arith.constant 0 : index
    %c0_4 = arith.constant 0 : index
    %3 = vector.load %arg3[%c0_3, %c0_4] : memref<1x10xf32, #tpu.memory_space<vmem>>, vector<1x10xf32>
    %4 = vector.broadcast %3 : vector<1x10xf32> to vector<8x10xf32>
    %5 = arith.addf %2, %4 : vector<8x10xf32>
    %cst_5 = arith.constant 0.000000e+00 : f32
    %6 = vector.broadcast %cst_5 : f32 to vector<8x10xf32>
    %7 = arith.maximumf %5, %6 : vector<8x10xf32>
    %c0_6 = arith.constant 0 : index
    %c0_7 = arith.constant 0 : index
    %8 = vector.load %arg4[%c0_6, %c0_7] : memref<1x10xf32, #tpu.memory_space<vmem>>, vector<1x10xf32>
    %9 = vector.broadcast %8 : vector<1x10xf32> to vector<8x10xf32>
    %10 = arith.mulf %7, %9 : vector<8x10xf32>
    %cst_8 = arith.constant dense<0.000000e+00> : vector<8xf32>
    %11 = vector.multi_reduction <add>, %10, %cst_8 [1] : vector<8x10xf32> to vector<8xf32>
    %12 = vector.shape_cast %11 : vector<8xf32> to vector<8x1xf32>
    %c0_9 = arith.constant 0 : index
    %c0_10 = arith.constant 0 : index
    %13 = vector.load %arg5[%c0_9, %c0_10] : memref<1x1xf32, #tpu.memory_space<vmem>>, vector<1x1xf32>
    %14 = vector.broadcast %13 : vector<1x1xf32> to vector<8x1xf32>
    %15 = arith.addf %12, %14 : vector<8x1xf32>
    %cst_11 = arith.constant 0.000000e+00 : f32
    %16 = vector.broadcast %cst_11 : f32 to vector<8x1xf32>
    %17 = arith.maximumf %15, %16 : vector<8x1xf32>
    %cst_12 = arith.constant 0.000000e+00 : f32
    %18 = vector.broadcast %cst_12 : f32 to vector<8x1xf32>
    %19 = arith.subf %18, %17 : vector<8x1xf32>
    %20 = math.exp %19 : vector<8x1xf32>
    %cst_13 = arith.constant 1.000000e+00 : f32
    %21 = vector.broadcast %cst_13 : f32 to vector<8x1xf32>
    %22 = arith.addf %21, %20 : vector<8x1xf32>
    %cst_14 = arith.constant 1.000000e+00 : f32
    %23 = vector.broadcast %cst_14 : f32 to vector<8x1xf32>
    %24 = arith.divf %23, %22 : vector<8x1xf32>
    %c0_15 = arith.constant 0 : index
    %c0_16 = arith.constant 0 : index
    %25 = vector.load %arg6[%c0_15, %c0_16] : memref<8x1xf32, #tpu.memory_space<vmem>>, vector<8x1xf32>
    tpu.vector_store %arg6[%c0_15, %c0_16], %24 {strides = array<i32>} : memref<8x1xf32, #tpu.memory_space<vmem>>, vector<8x1xf32>,
    return
  }
  func.func @transform_0(%arg0: i32) -> (i32, i32) {
    %c0_i32 = arith.constant 0 : i32
    %c0_i32_0 = arith.constant 0 : i32
    return %arg0, %c0_i32 : i32, i32
  }
  func.func @transform_1(%arg0: i32) -> (i32, i32) {
    %c0_i32 = arith.constant 0 : i32
    %c0_i32_0 = arith.constant 0 : i32
    %c0_i32_1 = arith.constant 0 : i32
    return %c0_i32, %c0_i32_0 : i32, i32
  }
  func.func @transform_2(%arg0: i32) -> (i32, i32) {
    %c0_i32 = arith.constant 0 : i32
    %c0_i32_0 = arith.constant 0 : i32
    %c0_i32_1 = arith.constant 0 : i32
    return %c0_i32, %c0_i32_0 : i32, i32
  }
  func.func @transform_3(%arg0: i32) -> (i32, i32) {
    %c0_i32 = arith.constant 0 : i32
    %c0_i32_0 = arith.constant 0 : i32
    %c0_i32_1 = arith.constant 0 : i32
    return %c0_i32, %c0_i32_0 : i32, i32
  }
  func.func @transform_4(%arg0: i32) -> (i32, i32) {
    %c0_i32 = arith.constant 0 : i32
    %c0_i32_0 = arith.constant 0 : i32
    %c0_i32_1 = arith.constant 0 : i32
    return %c0_i32, %c0_i32_0 : i32, i32
  }
  func.func @transform_5(%arg0: i32) -> (i32, i32) {
    %c0_i32 = arith.constant 0 : i32
    %c0_i32_0 = arith.constant 0 : i32
    return %arg0, %c0_i32 : i32, i32
  }
}

</mosaic_0001>

<llo_original>
// kernel: tpu_custom_call.1
$region0: #{tpu_custom_call.1}
  #allocation0 [shape = 'u32[]', space=smem, size = 0x4, offset = 0x4, fixed_abs, tag = 'smem constant byte address 0x4 - core index']
  #allocation1 [shape = 'u32[72,128]{1,0:T(1,128)}', space=vmem, size = 0x9000, scoped, tag = 'internal scratch']
  #allocation2 [shape = 'f32[1,1]{1,0:T(1,128)S(1)}', space=vmem, size = 0x200, scoped, tag = 'scoped memory for tpu_custom_call.1']
  %s0 = inlined_call_operand.hbm [shape: f32[8,12], index: 0, kind: input, shape index: {}]
  %s1 = inlined_call_operand.hbm [shape: f32[12,10], index: 1, kind: input, shape index: {}]
  %s2 = inlined_call_operand.vmem [shape: f32[1,10], index: 2, kind: input, shape index: {}]
  %s3 = inlined_call_operand.vmem [shape: f32[1,10], index: 3, kind: input, shape index: {}]
  %s4 = inlined_call_operand.<no memory space> [shape: f32[1,1], index: 4, kind: input, shape index: {}]
  %s5 = inlined_call_operand.vmem [shape: f32[8,1], index: 5, kind: output, shape index: {}]
  %s6 = sld [smem:[#allocation0]]
  $region38: #{tpu_custom_call.1} parent=0
    _
  %s8 = ssub.s32 1, %s6
  %s9 = scalar_select 0, %s8, %s6
  %v10 = vstv %s4
  %11 = vst [vmem:[#allocation2] sm:$0x1] %v10
  $region1: #{tpu_custom_call.1} parent=0
    #allocation3 [shape = 'u8[4096]{0}', space=vmem, size = 0x1000, scoped, tag = 'input window, operand 0, single buffered']
    #allocation4 [shape = 's32[1]{0}', space=sflag, size = 0x4, scoped, tag = 'scoped memory for tpu_custom_call.1']
    #allocation5 [shape = 'u8[8192]{0}', space=vmem, size = 0x2000, scoped, tag = 'input window, operand 1, single buffered']
    #allocation6 [shape = 's32[1]{0}', space=sflag, size = 0x4, scoped, tag = 'scoped memory for tpu_custom_call.1']
    %12 = vsyncpa [#allocation4], 0
    %13 = vsyncpa [#allocation6], 0
    // Predicated region
    $region2: #{tpu_custom_call.1} parent=1 // pred_check
      _
    $region3: #{tpu_custom_call.1} parent=1 // pred_check_branch
      %15 = sbr.rel (0) target = $region5
    $region4: #{tpu_custom_call.1} parent=1 // pred_region
      %17 = vsyncadd [#allocation4], 0
      %s19 = sshll.u32 %s0, 4
      %s20 = int_to_ptr.hbm [resolvable:$true] %s19
      %s21 = sshll.u32 [#allocation3], 4
      %s22 = int_to_ptr.vmem [resolvable:$true] %s21
      %24 = dma.hbm_to_vmem [thread:$0]  %s20, 128, %s22, [#allocation4]
    $region5: #{tpu_custom_call.1} parent=1 // pred_fallthru
      _
    // Predicated region
    $region6: #{tpu_custom_call.1} parent=1 // pred_check
      _
    $region7: #{tpu_custom_call.1} parent=1 // pred_check_branch
      %26 = sbr.rel (0) target = $region9
    $region8: #{tpu_custom_call.1} parent=1 // pred_region
      %28 = vsyncadd [#allocation6], 0
      %s29 = sshll.u32 %s1, 4
      %s30 = int_to_ptr.hbm [resolvable:$true] %s29
      %s31 = sshll.u32 [#allocation5], 4
      %s32 = int_to_ptr.vmem [resolvable:$true] %s31
      %37 = dma.hbm_to_vmem [thread:$0]  %s30, 256, %s32, [#allocation6], 128, 128, 8
    $region9: #{tpu_custom_call.1} parent=1 // pred_fallthru
      _
    // Predicated region
    $region10: #{tpu_custom_call.1} parent=1 // pred_check
      _
    $region11: #{tpu_custom_call.1} parent=1 // pred_check_branch
      %39 = sbr.rel (0) target = $region13
    $region12: #{tpu_custom_call.1} parent=1 // pred_region
      _
    $region13: #{tpu_custom_call.1} parent=1 // pred_fallthru
      _
    // Predicated region
    $region14: #{tpu_custom_call.1} parent=1 // pred_check
      _
    $region15: #{tpu_custom_call.1} parent=1 // pred_check_branch
      %41 = sbr.rel (0) target = $region17
    $region16: #{tpu_custom_call.1} parent=1 // pred_region
      _
    $region17: #{tpu_custom_call.1} parent=1 // pred_fallthru
      _
    // Predicated region
    $region18: #{tpu_custom_call.1} parent=1 // pred_check
      _
    $region19: #{tpu_custom_call.1} parent=1 // pred_check_branch
      %43 = sbr.rel (0) target = $region21
    $region20: #{tpu_custom_call.1} parent=1 // pred_region
      _
    $region21: #{tpu_custom_call.1} parent=1 // pred_fallthru
      _
    // Predicated region
    $region22: #{tpu_custom_call.1} parent=1 // pred_check
      _
    $region23: #{tpu_custom_call.1} parent=1 // pred_check_branch
      %45 = sbr.rel (0) target = $region25
    $region24: #{tpu_custom_call.1} parent=1 // pred_region
      %47 = dma.done [#allocation4], 128
    $region25: #{tpu_custom_call.1} parent=1 // pred_fallthru
      _
    // Predicated region
    $region26: #{tpu_custom_call.1} parent=1 // pred_check
      _
    $region27: #{tpu_custom_call.1} parent=1 // pred_check_branch
      %49 = sbr.rel (0) target = $region29
    $region28: #{tpu_custom_call.1} parent=1 // pred_region
      %51 = dma.done [#allocation6], 256
    $region29: #{tpu_custom_call.1} parent=1 // pred_fallthru
      _
    %v52 = vld [vmem:[#allocation3] sm:$0xff]
    %v53 = vld [vmem:[#allocation5] sm:$0xff]
    %v54 = vld [vmem:[#allocation5 + $0x8] sm:$0xf]
    %v55 = vld [vmem:[%s2] sm:$0x1]
    %v57 = vperm.slane %v55, 0
    %vm59 = vcmask 97280
    %v61 = vsel %vm59, %v52, 0
    %vm63 = vcmask 1043456
    %v65 = vsel %vm63, %v54, 0
    %67 = vmatpush.msra.mxu0 0.0
    %68 = vmatpush.msra.mxu0 0.0
    %69 = vmatpush.msra.mxu0 0.0
    %70 = vmatpush.msra.mxu0 0.0
    %71 = vmatpush.msra.mxu0 0.0
    %72 = vmatpush.msra.mxu0 0.0
    %73 = vmatpush.msra.mxu0 0.0
    %74 = vmatpush.msra.mxu0 0.0
    %75 = vmatpush.msra.mxu0 0.0
    %76 = vmatpush.msra.mxu0 0.0
    %77 = vmatpush.msra.mxu0 0.0
    %78 = vmatpush.msra.mxu0 0.0
    %79 = vmatpush.msra.mxu0 0.0
    %80 = vmatpush.msra.mxu0 0.0
    %81 = vmatpush.msra.mxu0 %v65
    %82 = vmatpush.msra.mxu0 %v53
    %83 = vmatmul.f32.gmra.mxu0 %v61
    %v84 = vpop.f32.mrf.mxu0
    %v85 = vadd.f32 %v57, %v84
    %86 = vdwg.mxu0
    %v87 = vmax.f32 %v85, 0.0
    %v88 = vld [vmem:[%s3] sm:$0x1]
    %v90 = vperm.slane %v88, 0
    %v92 = vmul.f32 %v87, %v90
    %vm93 = vcmask 80896
    %v94 = vsel %vm93, %v92, 0.0
    %95 = vadd.xlane.f32.xlu0 %v94
    %v96 = vpop.xlane.xlu0 %95
    %v97 = vld [vmem:[#allocation2] sm:$0x1]
    %v99 = vperm.slane %v97, 0
    %v101 = vadd.f32 %v96, %v99
    %v102 = vmax.f32 %v101, 0.0
    %v103 = vsub.f32 0.0, %v102
    %v104 = vmul.f32 %v103, 1.442695
    %v105 = vpow.pop %v104
    %v106 = vadd.f32 %v105, 1.0
    %v107 = vrcp.pop %v106
    %v108 = vmul.f32 %v106, %v107
    %v109 = vsub.f32 1.0, %v108
    %v110 = vmul.f32 %v107, %v109
    %v111 = vadd.f32 %v107, %v110
    %vm112 = vweird.f32 %v106
    %vm113 = vweird.f32 %v107
    %vm114 = vmor %vm112, %vm113
    %v115 = vsel %vm114, %v107, %v111
    %v116 = vand.u32 2147483647, %v106
    %vm117 = vcmp.eq.f32.partialorder %v116, 8.507059e+37
    %v118 = vand.u32 %v106, 2147483648
    %v119 = vor.u32 1.1754944e-38, %v118
    %v120 = vsel %vm117, %v119, %v115
    %v121 = vmul.f32 1.0, %v120
    %vm122 = vcmask 7168
    %123 = vst.msk [vmem:[%s5] sm:$0xff] %vm122, %v121
    // Predicated region
    $region30: #{tpu_custom_call.1} parent=1 // pred_check
      _
    $region31: #{tpu_custom_call.1} parent=1 // pred_check_branch
      %125 = sbr.rel (0) target = $region33
    $region32: #{tpu_custom_call.1} parent=1 // pred_region
      _
    $region33: #{tpu_custom_call.1} parent=1 // pred_fallthru
      _
    // Predicated region
    $region34: #{tpu_custom_call.1} parent=1 // pred_check
      _
    $region35: #{tpu_custom_call.1} parent=1 // pred_check_branch
      %127 = sbr.rel (0) target = $region37
    $region36: #{tpu_custom_call.1} parent=1 // pred_region
      _
    $region37: #{tpu_custom_call.1} parent=1 // pred_fallthru
      _
    %128 = vsyncpa [#allocation4], 1
    %129 = vsyncpa [#allocation6], 1

</llo_original>
